<compile_context>
chip_gen: v6e
topology: v6e:2x2x1
jax: 0.10.0
libtpu: 0.0.40
codegen_flags: <defaults>
</compile_context>

<pallas_src>
import jax
import jax.numpy as jnp
from jax.experimental import pallas as pl
from jax.experimental.pallas import tpu as pltpu

_DISC, _MU, _VAR = 4, 8, 8
_PACKED = _DISC + _MU + _VAR          # 20 useful lanes
_LANES = 128                          # lane-dense padded output width
_FEAT = 128                           # input feature dim


def _qhead_kernel(x_ref, w_ref, b_ref, out_ref):
    # x: [TB, 128], w: [128, 128] (fused + zero-padded), b: [1, 128]
    x = x_ref[...]
    y = jnp.dot(x, w_ref[...], preferred_element_type=jnp.float32) + b_ref[...]
    # exp() only on the var lanes (12..19); disc/mu and padding stay linear.
    col = jax.lax.broadcasted_iota(jnp.int32, y.shape, dimension=1)
    var_mask = (col >= _DISC + _MU) & (col < _PACKED)
    out_ref[...] = jnp.where(var_mask, jnp.exp(y), y).astype(out_ref.dtype)


def fuse_params(params):
    """Concatenate the three heads into one [128,128] weight / [1,128] bias."""
    w = jnp.concatenate(
        [params["disc_w"], params["mu_w"], params["var_w"]], axis=1)   # [128,20]
    b = jnp.concatenate(
        [params["disc_b"], params["mu_b"], params["var_b"]], axis=1)   # [1,20]
    w = jnp.pad(w, ((0, 0), (0, _LANES - _PACKED)))                    # [128,128]
    b = jnp.pad(b, ((0, 0), (0, _LANES - _PACKED)))                    # [1,128]
    return w, b


def lstm_q_head(x, w_fused, b_fused):
    """x: [B, 128] float32. Returns (disc_logits, mu, var) matching torch."""
    B, D = x.shape
    assert D == _FEAT

    # Row-tile the batch. TB=B (full dim, always layout-legal) when small;
    # 1024-row tiles at large B stay well under v7x's 32 MiB scoped VMEM
    # even double-buffered (1024*128*4 B ≈ 0.5 MiB per buffer).
    TB = B if B <= 1024 else 1024
    n_b = pl.cdiv(B, TB)

    out = pl.pallas_call(
        _qhead_kernel,
        out_shape=jax.ShapeDtypeStruct((B, _LANES), jnp.float32),
        grid_spec=pltpu.PrefetchScalarGridSpec(
            num_scalar_prefetch=0,
            grid=(n_b,),
            in_specs=[
                pl.BlockSpec((TB, _FEAT), lambda i: (i, 0)),      # x tile
                pl.BlockSpec((_FEAT, _LANES), lambda i: (0, 0)),  # fused W (resident)
                pl.BlockSpec((1, _LANES), lambda i: (0, 0)),      # fused b (resident)
            ],
            out_specs=pl.BlockSpec((TB, _LANES), lambda i: (i, 0)),
        ),
        compiler_params=pltpu.CompilerParams(
            dimension_semantics=("parallel",)),
        cost_estimate=pl.CostEstimate(
            flops=2 * B * _FEAT * _LANES,
            transcendentals=B * _VAR,
            bytes_accessed=4 * (B * _FEAT + _FEAT * _LANES + _LANES + B * _LANES),
        ),
    )(x, w_fused, b_fused)

    disc = out[:, :_DISC]
    mu = out[:, _DISC:_DISC + _MU]
    var = out[:, _DISC + _MU:_PACKED]
    # Mimic torch .squeeze(): drops any size-1 dims (only matters if B == 1).
    return jnp.squeeze(disc), jnp.squeeze(mu), jnp.squeeze(var)


def init_params(key):
    """Deterministic init matching nn.Linear shapes (stored transposed [in,out])."""
    ks = jax.random.split(key, 6)

    def lin(kw, kb, fan_in, fan_out):
        bound = 1.0 / jnp.sqrt(fan_in)
        w = jax.random.uniform(kw, (fan_in, fan_out), jnp.float32, -bound, bound)
        b = jax.random.uniform(kb, (1, fan_out), jnp.float32, -bound, bound)
        return w, b

    dw, db = lin(ks[0], ks[1], _FEAT, _DISC)
    mw, mb = lin(ks[2], ks[3], _FEAT, _MU)
    vw, vb = lin(ks[4], ks[5], _FEAT, _VAR)
    return {"disc_w": dw, "disc_b": db,
            "mu_w": mw, "mu_b": mb,
            "var_w": vw, "var_b": vb}


if __name__ == "__main__":
    key = jax.random.PRNGKey(0)
    k_x, k_p = jax.random.split(key)

    B = 8
    x = jax.random.normal(k_x, (B, _FEAT), jnp.float32)
    params = init_params(k_p)
    w_fused, b_fused = fuse_params(params)   # fuse once, outside the hot path

    disc, mu, var = lstm_q_head(x, w_fused, b_fused)
    jax.block_until_ready((disc, mu, var))

    # Reference check in plain JAX.
    disc_ref = x @ params["disc_w"] + params["disc_b"]
    mu_ref = x @ params["mu_w"] + params["mu_b"]
    var_ref = jnp.exp(x @ params["var_w"] + params["var_b"])
    assert jnp.allclose(disc, disc_ref, atol=1e-5)
    assert jnp.allclose(mu, mu_ref, atol=1e-5)
    assert jnp.allclose(var, var_ref, atol=1e-4)

    print("KERNEL_OK")
</pallas_src>

<mosaic_0001>
module attributes {stable_mosaic.version = 11 : i64} {
  func.func @_qhead_kernel(%arg0: i32, %arg1: memref<8x128xf32, #tpu.memory_space<vmem>>, %arg2: memref<128x128xf32, #tpu.memory_space<vmem>>, %arg3: memref<1x128xf32, #tpu.memory_space<vmem>>, %arg4: memref<8x128xf32, #tpu.memory_space<vmem>>) attributes {dimension_semantics = [#tpu.dimension_semantics<parallel>], iteration_bounds = array<i64: 1>, scalar_prefetch = 0 : i64, scratch_operands = 0 : i64, tpu.core_type = #tpu.core_type<tc>, window_params = [{transform_indices = @transform_0, window_bounds = array<i64: 8, 128>}, {pipeline_mode = #tpu.pipeline_mode<synchronous>, transform_indices = @transform_1, window_bounds = array<i64: 128, 128>}, {pipeline_mode = #tpu.pipeline_mode<synchronous>, transform_indices = @transform_2, window_bounds = array<i64: 1, 128>}, {transform_indices = @transform_3, window_bounds = array<i64: 8, 128>}]} {
    %c0 = arith.constant 0 : index
    %c0_0 = arith.constant 0 : index
    %0 = vector.load %arg1[%c0, %c0_0] : memref<8x128xf32, #tpu.memory_space<vmem>>, vector<8x128xf32>
    %c0_1 = arith.constant 0 : index
    %c0_2 = arith.constant 0 : index
    %1 = vector.load %arg2[%c0_1, %c0_2] : memref<128x128xf32, #tpu.memory_space<vmem>>, vector<128x128xf32>
    %cst = arith.constant dense<0.000000e+00> : vector<8x128xf32>
    %2 = tpu.matmul %0, %1, %cst {dimension_numbers = #tpu.dot_dimension_numbers<[1], [0], [0], [1], [0, 0, 1, 1], [], []>} : vector<8x128xf32>, vector<128x128xf32>, vector<8x128xf32> -> vector<8x128xf32>
    %c0_3 = arith.constant 0 : index
    %c0_4 = arith.constant 0 : index
    %3 = vector.load %arg3[%c0_3, %c0_4] : memref<1x128xf32, #tpu.memory_space<vmem>>, vector<1x128xf32>
    %4 = vector.broadcast %3 : vector<1x128xf32> to vector<8x128xf32>
    %5 = arith.addf %2, %4 : vector<8x128xf32>
    %6 = tpu.iota {dimensions = array<i32: 1>} : vector<8x128xi32>
    %c12_i32 = arith.constant 12 : i32
    %7 = vector.broadcast %c12_i32 : i32 to vector<8x128xi32>
    %8 = arith.cmpi sge, %6, %7 : vector<8x128xi32>
    %c20_i32 = arith.constant 20 : i32
    %9 = vector.broadcast %c20_i32 : i32 to vector<8x128xi32>
    %10 = arith.cmpi slt, %6, %9 : vector<8x128xi32>
    %11 = arith.andi %8, %10 : vector<8x128xi1>
    %12 = math.exp %5 : vector<8x128xf32>
    %13 = arith.select %11, %12, %5 : vector<8x128xi1>, vector<8x128xf32>
    %c0_5 = arith.constant 0 : index
    %c0_6 = arith.constant 0 : index
    %14 = vector.load %arg4[%c0_5, %c0_6] : memref<8x128xf32, #tpu.memory_space<vmem>>, vector<8x128xf32>
    tpu.vector_store %arg4[%c0_5, %c0_6], %13 {strides = array<i32>} : memref<8x128xf32, #tpu.memory_space<vmem>>, vector<8x128xf32>,
    return
  }
  func.func @transform_0(%arg0: i32) -> (i32, i32) {
    %c0_i32 = arith.constant 0 : i32
    %c0_i32_0 = arith.constant 0 : i32
    return %arg0, %c0_i32 : i32, i32
  }
  func.func @transform_1(%arg0: i32) -> (i32, i32) {
    %c0_i32 = arith.constant 0 : i32
    %c0_i32_0 = arith.constant 0 : i32
    %c0_i32_1 = arith.constant 0 : i32
    return %c0_i32, %c0_i32_0 : i32, i32
  }
  func.func @transform_2(%arg0: i32) -> (i32, i32) {
    %c0_i32 = arith.constant 0 : i32
    %c0_i32_0 = arith.constant 0 : i32
    %c0_i32_1 = arith.constant 0 : i32
    return %c0_i32, %c0_i32_0 : i32, i32
  }
  func.func @transform_3(%arg0: i32) -> (i32, i32) {
    %c0_i32 = arith.constant 0 : i32
    %c0_i32_0 = arith.constant 0 : i32
    return %arg0, %c0_i32 : i32, i32
  }
}

</mosaic_0001>

<llo_original>
// kernel: tpu_custom_call.1
$region0: #{tpu_custom_call.1}
  #allocation0 [shape = 'u32[]', space=smem, size = 0x4, offset = 0x4, fixed_abs, tag = 'smem constant byte address 0x4 - core index']
  #allocation1 [shape = 'u32[144,128]{1,0:T(1,128)}', space=vmem, size = 0x12000, scoped, tag = 'internal scratch']
  %s0 = inlined_call_operand.hbm [shape: f32[8,128], index: 0, kind: input, shape index: {}]
  %s1 = inlined_call_operand.hbm [shape: f32[128,128], index: 1, kind: input, shape index: {}]
  %s2 = inlined_call_operand.vmem [shape: f32[1,128], index: 2, kind: input, shape index: {}]
  %s3 = inlined_call_operand.hbm [shape: f32[8,128], index: 3, kind: output, shape index: {}]
  %s4 = sld [smem:[#allocation0]]
  $region30: #{tpu_custom_call.1} parent=0
    _
  %s6 = ssub.s32 1, %s4
  %s7 = scalar_select 0, %s6, %s4
  $region1: #{tpu_custom_call.1} parent=0
    #allocation2 [shape = 'u8[4096]{0}', space=vmem, size = 0x1000, scoped, tag = 'input window, operand 0, single buffered']
    #allocation3 [shape = 's32[1]{0}', space=sflag, size = 0x4, scoped, tag = 'scoped memory for tpu_custom_call.1']
    #allocation4 [shape = 's32[1]{0}', space=sflag, size = 0x4, scoped, tag = 'scoped memory for tpu_custom_call.1']
    #allocation5 [shape = 'u8[65536]{0}', space=vmem, size = 0x10000, scoped, tag = 'input window, operand 1, single buffered']
    #allocation6 [shape = 's32[1]{0}', space=sflag, size = 0x4, scoped, tag = 'scoped memory for tpu_custom_call.1']
    #allocation7 [shape = 'u8[4096]{0}', space=vmem, size = 0x1000, scoped, tag = 'output window, operand 0, single buffered']
    %8 = vsyncpa [#allocation3], 0
    %9 = vsyncpa [#allocation6], 0
    %10 = vsyncpa [#allocation4], 0
    // Predicated region
    $region2: #{tpu_custom_call.1} parent=1 // pred_check
      _
    $region3: #{tpu_custom_call.1} parent=1 // pred_check_branch
      %12 = sbr.rel (0) target = $region5
    $region4: #{tpu_custom_call.1} parent=1 // pred_region
      %s14 = ssub.s32 128, 128
      %15 = vsyncadd [#allocation3], %s14
      %s17 = sshll.u32 [#allocation2], 4
      %s18 = int_to_ptr.vmem [resolvable:$true] %s17
      %20 = dma.hbm_to_vmem [thread:$0]  %s0, 128, %s18, [#allocation3]
    $region5: #{tpu_custom_call.1} parent=1 // pred_fallthru
      _
    // Predicated region
    $region6: #{tpu_custom_call.1} parent=1 // pred_check
      _
    $region7: #{tpu_custom_call.1} parent=1 // pred_check_branch
      %22 = sbr.rel (0) target = $region9
    $region8: #{tpu_custom_call.1} parent=1 // pred_region
      %s24 = ssub.s32 2048, 2048
      %25 = vsyncadd [#allocation6], %s24
      %s26 = sshll.u32 [#allocation5], 4
      %s27 = int_to_ptr.vmem [resolvable:$true] %s26
      %32 = dma.hbm_to_vmem [thread:$0]  %s1, 2048, %s27, [#allocation6], 128, 128, 8
    $region9: #{tpu_custom_call.1} parent=1 // pred_fallthru
      _
    // Predicated region
    $region10: #{tpu_custom_call.1} parent=1 // pred_check
      _
    $region11: #{tpu_custom_call.1} parent=1 // pred_check_branch
      %34 = sbr.rel (0) target = $region13
    $region12: #{tpu_custom_call.1} parent=1 // pred_region
      _
    $region13: #{tpu_custom_call.1} parent=1 // pred_fallthru
      _
    // Predicated region
    $region14: #{tpu_custom_call.1} parent=1 // pred_check
      _
    $region15: #{tpu_custom_call.1} parent=1 // pred_check_branch
      %36 = sbr.rel (0) target = $region17
    $region16: #{tpu_custom_call.1} parent=1 // pred_region
      %37 = dma.done [#allocation3], 128
    $region17: #{tpu_custom_call.1} parent=1 // pred_fallthru
      _
    // Predicated region
    $region18: #{tpu_custom_call.1} parent=1 // pred_check
      _
    $region19: #{tpu_custom_call.1} parent=1 // pred_check_branch
      %39 = sbr.rel (0) target = $region21
    $region20: #{tpu_custom_call.1} parent=1 // pred_region
      %40 = dma.done [#allocation6], 2048
    $region21: #{tpu_custom_call.1} parent=1 // pred_fallthru
      _
    %v41 = vld [vmem:[#allocation2] sm:$0xff]
    %v42 = vld [vmem:[#allocation5] sm:$0xff]
    %v43 = vld [vmem:[#allocation5 + $0x8] sm:$0xff]
    %v44 = vld [vmem:[#allocation5 + $0x10] sm:$0xff]
    %v45 = vld [vmem:[#allocation5 + $0x18] sm:$0xff]
    %v46 = vld [vmem:[#allocation5 + $0x20] sm:$0xff]
    %v47 = vld [vmem:[#allocation5 + $0x28] sm:$0xff]
    %v48 = vld [vmem:[#allocation5 + $0x30] sm:$0xff]
    %v49 = vld [vmem:[#allocation5 + $0x38] sm:$0xff]
    %v50 = vld [vmem:[#allocation5 + $0x40] sm:$0xff]
    %v51 = vld [vmem:[#allocation5 + $0x48] sm:$0xff]
    %v52 = vld [vmem:[#allocation5 + $0x50] sm:$0xff]
    %v53 = vld [vmem:[#allocation5 + $0x58] sm:$0xff]
    %v54 = vld [vmem:[#allocation5 + $0x60] sm:$0xff]
    %v55 = vld [vmem:[#allocation5 + $0x68] sm:$0xff]
    %v56 = vld [vmem:[#allocation5 + $0x70] sm:$0xff]
    %v57 = vld [vmem:[#allocation5 + $0x78] sm:$0xff]
    %v58 = vld [vmem:[%s2] sm:$0x1]
    %v60 = vlaneseq
    %v61 = vshrl.u32 %v60, 7
    %v62 = vsub.s32 0, %v61
    %v63 = vrot.slane %v58, %v62
    %65 = vmatprep.subr.mxu0 0.0
    %66 = vmatpush1.msra.mxu0 %v57
    %67 = vmatprep.subr.mxu0 0.0
    %68 = vmatpush1.msra.mxu0 %v56
    %69 = vmatprep.subr.mxu0 0.0
    %70 = vmatpush1.msra.mxu0 %v55
    %71 = vmatprep.subr.mxu0 0.0
    %72 = vmatpush1.msra.mxu0 %v54
    %73 = vmatprep.subr.mxu0 0.0
    %74 = vmatpush1.msra.mxu0 %v53
    %75 = vmatprep.subr.mxu0 0.0
    %76 = vmatpush1.msra.mxu0 %v52
    %77 = vmatprep.subr.mxu0 0.0
    %78 = vmatpush1.msra.mxu0 %v51
    %79 = vmatprep.subr.mxu0 0.0
    %80 = vmatpush1.msra.mxu0 %v50
    %81 = vmatprep.subr.mxu0 0.0
    %82 = vmatpush1.msra.mxu0 %v49
    %83 = vmatprep.subr.mxu0 0.0
    %84 = vmatpush1.msra.mxu0 %v48
    %85 = vmatprep.subr.mxu0 0.0
    %86 = vmatpush1.msra.mxu0 %v47
    %87 = vmatprep.subr.mxu0 0.0
    %88 = vmatpush1.msra.mxu0 %v46
    %89 = vmatprep.subr.mxu0 0.0
    %90 = vmatpush1.msra.mxu0 %v45
    %91 = vmatprep.subr.mxu0 0.0
    %92 = vmatpush1.msra.mxu0 %v44
    %93 = vmatprep.subr.mxu0 0.0
    %94 = vmatpush1.msra.mxu0 %v43
    %95 = vmatprep.subr.mxu0 0.0
    %96 = vmatpush1.msra.mxu0 %v42
    %97 = vmatprep.subr.mxu0 0.0
    %98 = vmatpush2.msra.mxu0 0.0
    %99 = vmatprep.subr.mxu0 0.0
    %100 = vmatpush2.msra.mxu0 0.0
    %101 = vmatprep.subr.mxu0 0.0
    %102 = vmatpush2.msra.mxu0 0.0
    %103 = vmatprep.subr.mxu0 0.0
    %104 = vmatpush2.msra.mxu0 0.0
    %105 = vmatprep.subr.mxu0 0.0
    %106 = vmatpush2.msra.mxu0 0.0
    %107 = vmatprep.subr.mxu0 0.0
    %108 = vmatpush2.msra.mxu0 0.0
    %109 = vmatprep.subr.mxu0 0.0
    %110 = vmatpush2.msra.mxu0 0.0
    %111 = vmatprep.subr.mxu0 0.0
    %112 = vmatpush2.msra.mxu0 0.0
    %113 = vmatprep.subr.mxu0 0.0
    %114 = vmatpush2.msra.mxu0 0.0
    %115 = vmatprep.subr.mxu0 0.0
    %116 = vmatpush2.msra.mxu0 0.0
    %117 = vmatprep.subr.mxu0 0.0
    %118 = vmatpush2.msra.mxu0 0.0
    %119 = vmatprep.subr.mxu0 0.0
    %120 = vmatpush2.msra.mxu0 0.0
    %121 = vmatprep.subr.mxu0 0.0
    %122 = vmatpush2.msra.mxu0 0.0
    %123 = vmatprep.subr.mxu0 0.0
    %124 = vmatpush2.msra.mxu0 0.0
    %125 = vmatprep.subr.mxu0 0.0
    %126 = vmatpush2.msra.mxu0 0.0
    %127 = vmatprep.subr.mxu0 0.0
    %128 = vmatpush2.msra.mxu0 0.0
    %129 = vmatprep.mubr.f32.mxu0 0.0
    %130 = vmatmul.mubr.f32.gmra.mxu0 %v41
    %v131 = vpop.f32.mrf.mxu0
    %v132 = vadd.f32 %v63, %v131
    %v133 = vpop.f32.mrf.mxu0
    %134 = vdwg.mxu0
    %v135 = vlaneseq
    %v136 = vand.u32 %v135, 127
    %vm137 = vcmp.ge.s32.totalorder %v136, 12
    %vm138 = vcmp.lt.s32.totalorder %v136, 20
    %vm139 = vmand %vm137, %vm138
    %v140 = vmul.f32 %v132, 1.442695
    %v141 = vpow.pop %v140
    %v142 = vsel %vm139, %v141, %v132
    %143 = vst [vmem:[#allocation7] sm:$0xff] %v142
    // Predicated region
    $region22: #{tpu_custom_call.1} parent=1 // pred_check
      _
    $region23: #{tpu_custom_call.1} parent=1 // pred_check_branch
      %145 = sbr.rel (0) target = $region25
    $region24: #{tpu_custom_call.1} parent=1 // pred_region
      %s147 = ssub.s32 128, 128
      %148 = vsyncadd [#allocation4], %s147
      %s150 = sshll.u32 [#allocation7], 4
      %s151 = int_to_ptr.vmem [resolvable:$true] %s150
      %153 = dma.vmem_to_hbm [thread:$0]  %s151, 128, %s3, [#allocation4]
    $region25: #{tpu_custom_call.1} parent=1 // pred_fallthru
      _
    // Predicated region
    $region26: #{tpu_custom_call.1} parent=1 // pred_check
      _
    $region27: #{tpu_custom_call.1} parent=1 // pred_check_branch
      %155 = sbr.rel (0) target = $region29
    $region28: #{tpu_custom_call.1} parent=1 // pred_region
      %156 = dma.done [#allocation4], 128
    $region29: #{tpu_custom_call.1} parent=1 // pred_fallthru
      _
    %157 = vsyncpa [#allocation3], 1
    %158 = vsyncpa [#allocation6], 1
    %159 = vsyncpa [#allocation4], 1

</llo_original>
